<compile_context>
chip_gen: v6e
topology: v6e:2x2x1
jax: 0.10.0
libtpu: 0.0.40
codegen_flags: <defaults>
</compile_context>

<pallas_src>
import jax
import jax.numpy as jnp
import numpy as np
from jax.experimental import pallas as pl
from jax.experimental.pallas import tpu as pltpu

ACKS = 10
STATE_DIM = 2 + 2 + ACKS * 8   # 84
H = 128                        # hidden width
MAX_TILE_B = 4096              # ~10 MiB peak VMEM at this tile -> fits all gens


def critic_kernel(x_ref, w1_ref, b1_ref, w2_ref, b2_ref, w3_ref, b3_ref, o_ref):
    cdt = w1_ref.dtype                       # bf16 fast path / f32 exact path
    # x tile: [tile_b, 84] raw f32 from HBM; cast in-kernel (free VALU slots).
    x = x_ref[...].astype(cdt)

    # fc1 + ReLU  (MXU matmul, f32 accumulation; f32 VPU epilogue)
    h1 = jnp.dot(x, w1_ref[...], preferred_element_type=jnp.float32)    # [tile_b, 128]
    h1 = jnp.maximum(h1 + b1_ref[...], 0.0).astype(cdt)

    # fc2 + ReLU
    h2 = jnp.dot(h1, w2_ref[...], preferred_element_type=jnp.float32)   # [tile_b, 128]
    h2 = jnp.maximum(h2 + b2_ref[...], 0.0)

    # fc3 as a trans-B dot: (8,128) x (tile_b,128)^T -> (8, tile_b); row 0 real.
    # Result is lane-dense (batch on the lane axis) -> unmasked store.
    q = jax.lax.dot_general(
        w3_ref[...], h2,
        dimension_numbers=(((1,), (1,)), ((), ())),
        preferred_element_type=jnp.float32,
    )                                                                     # [8, tile_b]
    tile_b = o_ref.shape[-1]
    o_ref[...] = (q[0:1, :] + b3_ref[0, 0]).reshape(1, 1, tile_b)


def prepare_params(params, use_bf16=True):
    """Relayout parameters for the kernel (done once per param set)."""
    w1, b1, w2, b2, w3, b3 = params
    # fc3 weights as an (8, 128) operand: row 0 = real weights, rows 1..7 zero.
    w3r = jnp.pad(w3.reshape(1, H), ((0, 7), (0, 0)))
    cdt = jnp.bfloat16 if use_bf16 else jnp.float32
    return (w1.astype(cdt), b1, w2.astype(cdt), b2, w3r, b3)


def _choose_tile_b(batch):
    """>=2 balanced grid steps when possible, <=4096 rows, lane-width multiple."""
    t = -(-batch // 2)                 # ceil(batch / 2)
    t = ((t + 127) // 128) * 128       # round up to a full lane width
    return max(128, min(t, MAX_TILE_B))


def critic_forward(x, params, *, tile_b=None, use_bf16=True, core_parallel=False):
    """x: [B, STATE_DIM] float32 -> [B, 1] float32 (Q-value)."""
    B, F = x.shape
    assert F == STATE_DIM
    w1, b1, w2, b2, w3r, b3 = prepare_params(params, use_bf16=use_bf16)

    if tile_b is None:
        tile_b = _choose_tile_b(B)
    assert tile_b % 8 == 0
    nt = -(-B // tile_b)               # ceil-div
    b_pad = nt * tile_b
    # Only the batch dim is padded (no feature pad / cast round trip of x).
    xp = x if b_pad == B else jnp.pad(x, ((0, b_pad - B), (0, 0)))

    # On v7x, pass core_parallel=True to shard the batch grid across both TCs.
    sem = (pltpu.CORE_PARALLEL,) if core_parallel else ("parallel",)

    out = pl.pallas_call(
        critic_kernel,
        out_shape=jax.ShapeDtypeStruct((nt, 1, tile_b), jnp.float32),
        grid=(nt,),
        in_specs=[
            pl.BlockSpec((tile_b, STATE_DIM), lambda i: (i, 0)),      # x (pipelined, raw f32)
            pl.BlockSpec((STATE_DIM, H), lambda i: (0, 0)),           # w1 (VMEM-resident)
            pl.BlockSpec((1, H), lambda i: (0, 0)),                   # b1
            pl.BlockSpec((H, H), lambda i: (0, 0)),                   # w2
            pl.BlockSpec((1, H), lambda i: (0, 0)),                   # b2
            pl.BlockSpec((8, H), lambda i: (0, 0)),                   # w3 (row 0 real)
            pl.BlockSpec(memory_space=pltpu.MemorySpace.SMEM),        # b3 scalar
        ],
        out_specs=pl.BlockSpec((1, 1, tile_b), lambda i: (i, 0, 0)),  # lane-dense
        compiler_params=pltpu.CompilerParams(
            dimension_semantics=sem,
            vmem_limit_bytes=32 * 1024 * 1024,
        ),
    )(xp, w1, b1, w2, b2, w3r, b3)

    # (nt, 1, tile_b) -> (B, 1) to match the module.  Consumers that can take
    # the lane-dense slab should use out.reshape(-1)[:B] to skip the relayout.
    return out.reshape(b_pad)[:B].reshape(B, 1)


def init_params(key):
    """Deterministic init mirroring PyTorch nn.Linear default (U[-1/sqrt(fan_in), +])."""
    ks = jax.random.split(key, 6)

    def linear(kw, kb, fan_in, fan_out):
        bound = 1.0 / np.sqrt(fan_in)
        w = jax.random.uniform(kw, (fan_in, fan_out), jnp.float32, -bound, bound)
        b = jax.random.uniform(kb, (1, fan_out), jnp.float32, -bound, bound)
        return w, b

    w1, b1 = linear(ks[0], ks[1], STATE_DIM, H)
    w2, b2 = linear(ks[2], ks[3], H, H)
    w3, b3 = linear(ks[4], ks[5], H, 1)
    return (w1, b1, w2, b2, w3, b3)


def critic_ref(x, params, use_bf16=True):
    """Pure-JAX reference.  With use_bf16=True it mirrors the kernel's casts."""
    w1, b1, w2, b2, w3, b3 = params
    rd = (lambda a: a.astype(jnp.bfloat16).astype(jnp.float32)) if use_bf16 else (lambda a: a)
    hi = jax.lax.Precision.HIGHEST
    h1 = jnp.maximum(jnp.dot(rd(x), rd(w1), precision=hi) + b1, 0.0)
    h2 = jnp.maximum(jnp.dot(rd(h1), rd(w2), precision=hi) + b2, 0.0)
    return jnp.dot(h2, w3, precision=hi) + b3


if __name__ == "__main__":
    key = jax.random.PRNGKey(0)
    k_param, k_x = jax.random.split(key)

    B = 600  # exercises 2 batch tiles (tile_b=384) + ragged tail padding
    params = init_params(k_param)
    x = jax.random.normal(k_x, (B, STATE_DIM), jnp.float32)

    fwd = jax.jit(critic_forward,
                  static_argnames=("tile_b", "use_bf16", "core_parallel"))

    # f32 path: exact check against the module semantics.
    out32 = jax.block_until_ready(fwd(x, params, use_bf16=False))
    ref32 = critic_ref(x, params, use_bf16=False)
    assert out32.shape == (B, 1) and out32.dtype == jnp.float32
    np.testing.assert_allclose(np.asarray(out32), np.asarray(ref32), rtol=1e-4, atol=1e-4)

    # bf16 fast path (default): check against a cast-mirrored reference (tight)
    # and against the pure-f32 reference (loose).
    out16 = jax.block_until_ready(fwd(x, params, use_bf16=True))
    ref16 = critic_ref(x, params, use_bf16=True)
    assert out16.shape == (B, 1)
    np.testing.assert_allclose(np.asarray(out16), np.asarray(ref16), rtol=5e-3, atol=5e-3)
    np.testing.assert_allclose(np.asarray(out16), np.asarray(ref32), rtol=5e-2, atol=5e-2)

    print("KERNEL_OK")
</pallas_src>

<mosaic_0001>
module attributes {stable_mosaic.version = 11 : i64} {
  func.func @critic_kernel(%arg0: i32, %arg1: memref<384x84xf32, #tpu.memory_space<vmem>>, %arg2: memref<84x128xf32, #tpu.memory_space<vmem>>, %arg3: memref<1x128xf32, #tpu.memory_space<vmem>>, %arg4: memref<128x128xf32, #tpu.memory_space<vmem>>, %arg5: memref<1x128xf32, #tpu.memory_space<vmem>>, %arg6: memref<8x128xf32, #tpu.memory_space<vmem>>, %arg7: memref<1x1xf32, #tpu.memory_space<smem>>, %arg8: memref<1x1x384xf32, #tpu.memory_space<vmem>>) attributes {dimension_semantics = [#tpu.dimension_semantics<parallel>], iteration_bounds = array<i64: 2>, scalar_prefetch = 0 : i64, scratch_operands = 0 : i64, tpu.core_type = #tpu.core_type<tc>, window_params = [{transform_indices = @transform_0, window_bounds = array<i64: 384, 84>}, {pipeline_mode = #tpu.pipeline_mode<synchronous>, transform_indices = @transform_1, window_bounds = array<i64: 84, 128>}, {pipeline_mode = #tpu.pipeline_mode<synchronous>, transform_indices = @transform_2, window_bounds = array<i64: 1, 128>}, {pipeline_mode = #tpu.pipeline_mode<synchronous>, transform_indices = @transform_3, window_bounds = array<i64: 128, 128>}, {pipeline_mode = #tpu.pipeline_mode<synchronous>, transform_indices = @transform_4, window_bounds = array<i64: 1, 128>}, {pipeline_mode = #tpu.pipeline_mode<synchronous>, transform_indices = @transform_5, window_bounds = array<i64: 8, 128>}, {transform_indices = @transform_6, window_bounds = array<i64: 1, 1>}, {transform_indices = @transform_7, window_bounds = array<i64: 1, 1, 384>}]} {
    %c0 = arith.constant 0 : index
    %c0_0 = arith.constant 0 : index
    %0 = vector.load %arg1[%c0, %c0_0] : memref<384x84xf32, #tpu.memory_space<vmem>>, vector<384x84xf32>
    %c0_1 = arith.constant 0 : index
    %c0_2 = arith.constant 0 : index
    %1 = vector.load %arg2[%c0_1, %c0_2] : memref<84x128xf32, #tpu.memory_space<vmem>>, vector<84x128xf32>
    %cst = arith.constant dense<0.000000e+00> : vector<384x128xf32>
    %2 = tpu.matmul %0, %1, %cst {dimension_numbers = #tpu.dot_dimension_numbers<[1], [0], [0], [1], [0, 0, 1, 1], [], []>} : vector<384x84xf32>, vector<84x128xf32>, vector<384x128xf32> -> vector<384x128xf32>
    %c0_3 = arith.constant 0 : index
    %c0_4 = arith.constant 0 : index
    %3 = vector.load %arg3[%c0_3, %c0_4] : memref<1x128xf32, #tpu.memory_space<vmem>>, vector<1x128xf32>
    %4 = vector.broadcast %3 : vector<1x128xf32> to vector<384x128xf32>
    %5 = arith.addf %2, %4 : vector<384x128xf32>
    %cst_5 = arith.constant 0.000000e+00 : f32
    %6 = vector.broadcast %cst_5 : f32 to vector<384x128xf32>
    %7 = arith.maximumf %5, %6 : vector<384x128xf32>
    %c0_6 = arith.constant 0 : index
    %c0_7 = arith.constant 0 : index
    %8 = vector.load %arg4[%c0_6, %c0_7] : memref<128x128xf32, #tpu.memory_space<vmem>>, vector<128x128xf32>
    %cst_8 = arith.constant dense<0.000000e+00> : vector<384x128xf32>
    %9 = tpu.matmul %7, %8, %cst_8 {dimension_numbers = #tpu.dot_dimension_numbers<[1], [0], [0], [1], [0, 0, 1, 1], [], []>} : vector<384x128xf32>, vector<128x128xf32>, vector<384x128xf32> -> vector<384x128xf32>
    %c0_9 = arith.constant 0 : index
    %c0_10 = arith.constant 0 : index
    %10 = vector.load %arg5[%c0_9, %c0_10] : memref<1x128xf32, #tpu.memory_space<vmem>>, vector<1x128xf32>
    %11 = vector.broadcast %10 : vector<1x128xf32> to vector<384x128xf32>
    %12 = arith.addf %9, %11 : vector<384x128xf32>
    %cst_11 = arith.constant 0.000000e+00 : f32
    %13 = vector.broadcast %cst_11 : f32 to vector<384x128xf32>
    %14 = arith.maximumf %12, %13 : vector<384x128xf32>
    %c0_12 = arith.constant 0 : index
    %c0_13 = arith.constant 0 : index
    %15 = vector.load %arg6[%c0_12, %c0_13] : memref<8x128xf32, #tpu.memory_space<vmem>>, vector<8x128xf32>
    %cst_14 = arith.constant dense<0.000000e+00> : vector<8x384xf32>
    %16 = tpu.matmul %15, %14, %cst_14 {dimension_numbers = #tpu.dot_dimension_numbers<[1], [1], [0], [0], [0, 0, 1, 0], [], []>} : vector<8x128xf32>, vector<384x128xf32>, vector<8x384xf32> -> vector<8x384xf32>
    %17 = vector.extract_strided_slice %16 {offsets = [0, 0], sizes = [1, 384], strides = [1, 1]} : vector<8x384xf32> to vector<1x384xf32>
    %c0_15 = arith.constant 0 : index
    %c0_16 = arith.constant 0 : index
    %18 = memref.load %arg7[%c0_15, %c0_16] : memref<1x1xf32, #tpu.memory_space<smem>>
    %19 = vector.broadcast %18 : f32 to vector<1x384xf32>
    %20 = arith.addf %17, %19 : vector<1x384xf32>
    %21 = vector.shape_cast %20 : vector<1x384xf32> to vector<1x1x384xf32>
    %c0_17 = arith.constant 0 : index
    %c0_18 = arith.constant 0 : index
    %c0_19 = arith.constant 0 : index
    %22 = vector.load %arg8[%c0_17, %c0_18, %c0_19] : memref<1x1x384xf32, #tpu.memory_space<vmem>>, vector<1x1x384xf32>
    tpu.vector_store %arg8[%c0_17, %c0_18, %c0_19], %21 {strides = array<i32>} : memref<1x1x384xf32, #tpu.memory_space<vmem>>, vector<1x1x384xf32>,
    return
  }
  func.func @transform_0(%arg0: i32) -> (i32, i32) {
    %c0_i32 = arith.constant 0 : i32
    %c0_i32_0 = arith.constant 0 : i32
    return %arg0, %c0_i32 : i32, i32
  }
  func.func @transform_1(%arg0: i32) -> (i32, i32) {
    %c0_i32 = arith.constant 0 : i32
    %c0_i32_0 = arith.constant 0 : i32
    %c0_i32_1 = arith.constant 0 : i32
    return %c0_i32, %c0_i32_0 : i32, i32
  }
  func.func @transform_2(%arg0: i32) -> (i32, i32) {
    %c0_i32 = arith.constant 0 : i32
    %c0_i32_0 = arith.constant 0 : i32
    %c0_i32_1 = arith.constant 0 : i32
    return %c0_i32, %c0_i32_0 : i32, i32
  }
  func.func @transform_3(%arg0: i32) -> (i32, i32) {
    %c0_i32 = arith.constant 0 : i32
    %c0_i32_0 = arith.constant 0 : i32
    %c0_i32_1 = arith.constant 0 : i32
    return %c0_i32, %c0_i32_0 : i32, i32
  }
  func.func @transform_4(%arg0: i32) -> (i32, i32) {
    %c0_i32 = arith.constant 0 : i32
    %c0_i32_0 = arith.constant 0 : i32
    %c0_i32_1 = arith.constant 0 : i32
    return %c0_i32, %c0_i32_0 : i32, i32
  }
  func.func @transform_5(%arg0: i32) -> (i32, i32) {
    %c0_i32 = arith.constant 0 : i32
    %c0_i32_0 = arith.constant 0 : i32
    %c0_i32_1 = arith.constant 0 : i32
    return %c0_i32, %c0_i32_0 : i32, i32
  }
  func.func @transform_6(%arg0: i32) -> (i32, i32) {
    %c0_i32 = arith.constant 0 : i32
    %c0_i32_0 = arith.constant 0 : i32
    %c0_i32_1 = arith.constant 0 : i32
    return %c0_i32, %c0_i32_0 : i32, i32
  }
  func.func @transform_7(%arg0: i32) -> (i32, i32, i32) {
    %c0_i32 = arith.constant 0 : i32
    %c0_i32_0 = arith.constant 0 : i32
    %c0_i32_1 = arith.constant 0 : i32
    return %arg0, %c0_i32, %c0_i32_0 : i32, i32, i32
  }
}

</mosaic_0001>

<llo_original>
// kernel: critic_forward.1
$region0: #{critic_forward.1}
  #allocation0 [shape = 'u32[]', space=smem, size = 0x4, offset = 0x4, fixed_abs, tag = 'smem constant byte address 0x4 - core index']
  #allocation1 [shape = 'u32[144,128]{1,0:T(1,128)}', space=vmem, size = 0x12000, scoped, tag = 'internal scratch']
  #allocation2 [shape = 'f32[1,1]{1,0:T(1,128)S(6)}', space=smem, size = 0x200, scoped, tag = 'scoped memory for critic_forward.1']
  %s0 = inlined_call_operand.vmem [shape: f32[768,84], index: 0, kind: input, shape index: {}]
  %s1 = inlined_call_operand.vmem [shape: f32[84,128], index: 1, kind: input, shape index: {}]
  %s2 = inlined_call_operand.vmem [shape: f32[1,128], index: 2, kind: input, shape index: {}]
  %s3 = inlined_call_operand.vmem [shape: f32[128,128], index: 3, kind: input, shape index: {}]
  %s4 = inlined_call_operand.vmem [shape: f32[1,128], index: 4, kind: input, shape index: {}]
  %s5 = inlined_call_operand.vmem [shape: f32[8,128], index: 5, kind: input, shape index: {}]
  %s6 = inlined_call_operand.<no memory space> [shape: f32[1,1], index: 6, kind: input, shape index: {}]
  %s7 = inlined_call_operand.vmem [shape: f32[2,1,384], index: 7, kind: output, shape index: {}]
  %s8 = sld [smem:[#allocation0]]
  $region61: #{critic_forward.1} parent=0
    _
  %s10 = ssub.s32 1, %s8
  %s11 = scalar_select 0, %s10, %s8
  %12 = sst [smem:[#allocation2]] %s6
  loop: start=0, step=1, limit=4
  $region2: #{critic_forward.1} parent=0 // loop_pre_header
    _
  $region3: #{critic_forward.1} parent=0 // loop_header
    %s14 = sphi 0, %s18
    %p15 = scmp.ge.s32.totalorder %s14, 4
    %s24 = sphi 0, %s26
    %s27 = sphi 0, %s24
    %s28 = sphi 0, %s27
    %s44 = sphi 0, %s28
    %s48 = sphi 0, %s48
    %s50 = sphi 0, %s48
    %s51 = sphi 0, %s50
    %s65 = sphi 0, %s51
    %s69 = sphi 0, %s69
    %s71 = sphi 0, %s69
    %s72 = sphi 0, %s71
    %s86 = sphi 0, %s72
    %s90 = sphi 0, %s90
    %s92 = sphi 0, %s90
    %s93 = sphi 0, %s92
    %s107 = sphi 0, %s93
    %s111 = sphi 0, %s111
    %s113 = sphi 0, %s111
    %s114 = sphi 0, %s113
    %s128 = sphi 0, %s114
    %s132 = sphi 0, %s132
    %s134 = sphi 0, %s132
    %s135 = sphi 0, %s134
    %s149 = sphi 0, %s135
    %s153 = sphi 0, %s153
    %s155 = sphi 0, %s153
    %s156 = sphi 0, %s155
    %s170 = sphi 0, %s156
    %s176 = sphi 0, %s178
    %s179 = sphi 0, %s176
    %s180 = sphi 0, %s179
    %s196 = sphi 0, %s180
  $region4: #{critic_forward.1} parent=0 // loop_header_branch
    %17 = sbr.rel (%p15) target = $region8
  $region5: #{critic_forward.1} parent=0 // loop_body
    %s19 = ssub.s32 %s14, 1
    %s20 = ssub.s32 %s14, 2
    %s21 = sadd.s32 %s14, 1
    %s22 = ssub.s32 %s14, %s21
    %p23 = scmp.eq.s32.totalorder %s22, 0
    %s25 = sadd.s32 %s24, 1
    %s26 = scalar_select %p23, %s24, %s25
    %p29 = pneg %p23
    %p30 = scmp.eq.s32.totalorder %s14, 1
    %p31 = por %p29, %p30
    %p32 = scmp.ne.s32.totalorder %s24, %s27
    %p33 = scmp.eq.s32.totalorder %s14, 0
    %p34 = por %p32, %p33
    %p35 = scmp.ne.s32.totalorder %s24, %s27
    %p36 = scmp.eq.s32.totalorder %s19, 1
    %p37 = por %p35, %p36
    %p38 = scmp.ne.s32.totalorder %s27, %s28
    %p39 = scmp.eq.s32.totalorder %s19, 0
    %p40 = por %p38, %p39
    %p41 = scmp.ne.s32.totalorder %s27, %s28
    %p42 = scmp.eq.s32.totalorder %s20, 1
    %p43 = por %p41, %p42
    %p45 = scmp.ne.s32.totalorder %s28, %s44
    %p46 = scmp.eq.s32.totalorder %s20, 0
    %p47 = por %p45, %p46
    %s49 = sadd.s32 %s48, 1
    %p52 = scmp.eq.s32.totalorder %s14, 1
    %p53 = scmp.ne.s32.totalorder %s48, %s50
    %p54 = scmp.eq.s32.totalorder %s14, 0
    %p55 = por %p53, %p54
    %p56 = scmp.ne.s32.totalorder %s48, %s50
    %p57 = scmp.eq.s32.totalorder %s19, 1
    %p58 = por %p56, %p57
    %p59 = scmp.ne.s32.totalorder %s50, %s51
    %p60 = scmp.eq.s32.totalorder %s19, 0
    %p61 = por %p59, %p60
    %p62 = scmp.ne.s32.totalorder %s50, %s51
    %p63 = scmp.eq.s32.totalorder %s20, 1
    %p64 = por %p62, %p63
    %p66 = scmp.ne.s32.totalorder %s51, %s65
    %p67 = scmp.eq.s32.totalorder %s20, 0
    %p68 = por %p66, %p67
    %s70 = sadd.s32 %s69, 1
    %p73 = scmp.eq.s32.totalorder %s14, 1
    %p74 = scmp.ne.s32.totalorder %s69, %s71
    %p75 = scmp.eq.s32.totalorder %s14, 0
    %p76 = por %p74, %p75
    %p77 = scmp.ne.s32.totalorder %s69, %s71
    %p78 = scmp.eq.s32.totalorder %s19, 1
    %p79 = por %p77, %p78
    %p80 = scmp.ne.s32.totalorder %s71, %s72
    %p81 = scmp.eq.s32.totalorder %s19, 0
    %p82 = por %p80, %p81
    %p83 = scmp.ne.s32.totalorder %s71, %s72
    %p84 = scmp.eq.s32.totalorder %s20, 1
    %p85 = por %p83, %p84
    %p87 = scmp.ne.s32.totalorder %s72, %s86
    %p88 = scmp.eq.s32.totalorder %s20, 0
    %p89 = por %p87, %p88
    %s91 = sadd.s32 %s90, 1
    %p94 = scmp.eq.s32.totalorder %s14, 1
    %p95 = scmp.ne.s32.totalorder %s90, %s92
    %p96 = scmp.eq.s32.totalorder %s14, 0
    %p97 = por %p95, %p96
    %p98 = scmp.ne.s32.totalorder %s90, %s92
    %p99 = scmp.eq.s32.totalorder %s19, 1
    %p100 = por %p98, %p99
    %p101 = scmp.ne.s32.totalorder %s92, %s93
    %p102 = scmp.eq.s32.totalorder %s19, 0
    %p103 = por %p101, %p102
    %p104 = scmp.ne.s32.totalorder %s92, %s93
    %p105 = scmp.eq.s32.totalorder %s20, 1
    %p106 = por %p104, %p105
    %p108 = scmp.ne.s32.totalorder %s93, %s107
    %p109 = scmp.eq.s32.totalorder %s20, 0
    %p110 = por %p108, %p109
    %s112 = sadd.s32 %s111, 1
    %p115 = scmp.eq.s32.totalorder %s14, 1
    %p116 = scmp.ne.s32.totalorder %s111, %s113
    %p117 = scmp.eq.s32.totalorder %s14, 0
    %p118 = por %p116, %p117
    %p119 = scmp.ne.s32.totalorder %s111, %s113
    %p120 = scmp.eq.s32.totalorder %s19, 1
    %p121 = por %p119, %p120
    %p122 = scmp.ne.s32.totalorder %s113, %s114
    %p123 = scmp.eq.s32.totalorder %s19, 0
    %p124 = por %p122, %p123
    %p125 = scmp.ne.s32.totalorder %s113, %s114
    %p126 = scmp.eq.s32.totalorder %s20, 1
    %p127 = por %p125, %p126
    %p129 = scmp.ne.s32.totalorder %s114, %s128
    %p130 = scmp.eq.s32.totalorder %s20, 0
    %p131 = por %p129, %p130
    %s133 = sadd.s32 %s132, 1
    %p136 = scmp.eq.s32.totalorder %s14, 1
    %p137 = scmp.ne.s32.totalorder %s132, %s134
    %p138 = scmp.eq.s32.totalorder %s14, 0
    %p139 = por %p137, %p138
    %p140 = scmp.ne.s32.totalorder %s132, %s134
    %p141 = scmp.eq.s32.totalorder %s19, 1
    %p142 = por %p140, %p141
    %p143 = scmp.ne.s32.totalorder %s134, %s135
    %p144 = scmp.eq.s32.totalorder %s19, 0
    %p145 = por %p143, %p144
    %p146 = scmp.ne.s32.totalorder %s134, %s135
    %p147 = scmp.eq.s32.totalorder %s20, 1
    %p148 = por %p146, %p147
    %p150 = scmp.ne.s32.totalorder %s135, %s149
    %p151 = scmp.eq.s32.totalorder %s20, 0
    %p152 = por %p150, %p151
    %s154 = sadd.s32 %s153, 1
    %p157 = scmp.eq.s32.totalorder %s14, 1
    %p158 = scmp.ne.s32.totalorder %s153, %s155
    %p159 = scmp.eq.s32.totalorder %s14, 0
    %p160 = por %p158, %p159
    %p161 = scmp.ne.s32.totalorder %s153, %s155
    %p162 = scmp.eq.s32.totalorder %s19, 1
    %p163 = por %p161, %p162
    %p164 = scmp.ne.s32.totalorder %s155, %s156
    %p165 = scmp.eq.s32.totalorder %s19, 0
    %p166 = por %p164, %p165
    %p167 = scmp.ne.s32.totalorder %s155, %s156
    %p168 = scmp.eq.s32.totalorder %s20, 1
    %p169 = por %p167, %p168
    %p171 = scmp.ne.s32.totalorder %s156, %s170
    %p172 = scmp.eq.s32.totalorder %s20, 0
    %p173 = por %p171, %p172
    %s174 = ssub.s32 %s14, %s21
    %p175 = scmp.eq.s32.totalorder %s174, 0
    %s177 = sadd.s32 %s176, 1
    %s178 = scalar_select %p175, %s176, %s177
    %p181 = pneg %p175
    %p182 = scmp.eq.s32.totalorder %s14, 1
    %p183 = por %p181, %p182
    %p184 = scmp.ne.s32.totalorder %s176, %s179
    %p185 = scmp.eq.s32.totalorder %s14, 0
    %p186 = por %p184, %p185
    %p187 = scmp.ne.s32.totalorder %s176, %s179
    %p188 = scmp.eq.s32.totalorder %s19, 1
    %p189 = por %p187, %p188
    %p190 = scmp.ne.s32.totalorder %s179, %s180
    %p191 = scmp.eq.s32.totalorder %s19, 0
    %p192 = por %p190, %p191
    %p193 = scmp.ne.s32.totalorder %s179, %s180
    %p194 = scmp.eq.s32.totalorder %s20, 1
    %p195 = por %p193, %p194
    %p197 = scmp.ne.s32.totalorder %s180, %s196
    %p198 = scmp.eq.s32.totalorder %s20, 0
    %p199 = por %p197, %p198
    %p200 = scmp.le.s32.totalorder 1, %s14
    %p201 = scmp.lt.s32.totalorder %s14, 3
    %p202 = pnand %p200, %p201
    %p203 = pneg %p202
    // Predicated region
    $region9: #{critic_forward.1} parent=5 // pred_check
      _
    $region10: #{critic_forward.1} parent=5 // pred_check_branch
      %205 = sbr.rel (%p202) target = $region12
    $region11: #{critic_forward.1} parent=5 // pred_region
      %s206 = ssub.s32 %s14, 1
      // Predicated region
      $region13: #{critic_forward.1} parent=11 // pred_check
        %p207 = pneg %p61
      $region14: #{critic_forward.1} parent=11 // pred_check_branch
        %209 = sbr.rel (%p207) target = $region16
      $region15: #{critic_forward.1} parent=11 // pred_region
        _
      $region16: #{critic_forward.1} parent=11 // pred_fallthru
        _
      // Predicated region
      $region17: #{critic_forward.1} parent=11 // pred_check
        %p210 = pneg %p82
      $region18: #{critic_forward.1} parent=11 // pred_check_branch
        %212 = sbr.rel (%p210) target = $region20
      $region19: #{critic_forward.1} parent=11 // pred_region
        _
      $region20: #{critic_forward.1} parent=11 // pred_fallthru
        _
      // Predicated region
      $region21: #{critic_forward.1} parent=11 // pred_check
        %p213 = pneg %p103
      $region22: #{critic_forward.1} parent=11 // pred_check_branch
        %215 = sbr.rel (%p213) target = $region24
      $region23: #{critic_forward.1} parent=11 // pred_region
        _
      $region24: #{critic_forward.1} parent=11 // pred_fallthru
        _
      // Predicated region
      $region25: #{critic_forward.1} parent=11 // pred_check
        %p216 = pneg %p124
      $region26: #{critic_forward.1} parent=11 // pred_check_branch
        %218 = sbr.rel (%p216) target = $region28
      $region27: #{critic_forward.1} parent=11 // pred_region
        _
      $region28: #{critic_forward.1} parent=11 // pred_fallthru
        _
      // Predicated region
      $region29: #{critic_forward.1} parent=11 // pred_check
        %p219 = pneg %p145
      $region30: #{critic_forward.1} parent=11 // pred_check_branch
        %221 = sbr.rel (%p219) target = $region32
      $region31: #{critic_forward.1} parent=11 // pred_region
        _
      $region32: #{critic_forward.1} parent=11 // pred_fallthru
        _
      // Predicated region
      $region33: #{critic_forward.1} parent=11 // pred_check
        %p222 = pneg %p166
      $region34: #{critic_forward.1} parent=11 // pred_check_branch
        %224 = sbr.rel (%p222) target = $region36
      $region35: #{critic_forward.1} parent=11 // pred_region
        _
      $region36: #{critic_forward.1} parent=11 // pred_fallthru
        _
    $region12: #{critic_forward.1} parent=5 // pred_fallthru
      _
    %p225 = scmp.lt.s32.totalorder %s14, 2
    // Predicated region
    $region37: #{critic_forward.1} parent=5 // pred_check
      %p226 = pneg %p225
    $region38: #{critic_forward.1} parent=5 // pred_check_branch
      %228 = sbr.rel (%p226) target = $region40
    $region39: #{critic_forward.1} parent=5 // pred_region
      // Predicated region
      $region41: #{critic_forward.1} parent=39 // pred_check
        %p229 = pneg %p34
      $region42: #{critic_forward.1} parent=39 // pred_check_branch
        %231 = sbr.rel (%p229) target = $region44
      $region43: #{critic_forward.1} parent=39 // pred_region
        %s232 = smul.u32 48, %s14
        %p233 = scmp.lt.s32.totalorder %s232, 95
        %s234 = scalar_select %p233, %s232, 95
        %s235 = smul.addr %s234, 8
        %s236 = scalar_lea.vmem %s0, %s235
        %s237 = smul.u32 48, %s14
      $region44: #{critic_forward.1} parent=39 // pred_fallthru
        _
    $region40: #{critic_forward.1} parent=5 // pred_fallthru
      _
    %p238 = scmp.le.s32.totalorder 1, %s14
    %p239 = scmp.lt.s32.totalorder %s14, 3
    %p240 = pnand %p238, %p239
    %p241 = pneg %p240
    // Predicated region
    $region45: #{critic_forward.1} parent=5 // pred_check
      _
    $region46: #{critic_forward.1} parent=5 // pred_check_branch
      %243 = sbr.rel (%p240) target = $region48
    $region47: #{critic_forward.1} parent=5 // pred_region
      %s244 = ssub.s32 %s14, 1
      %s245 = smul.u32 48, %s19
      %p246 = scmp.lt.s32.totalorder %s245, 95
      %s247 = scalar_select %p246, %s245, 95
      %s248 = smul.addr %s247, 8
      %s249 = scalar_lea.vmem %s0, %s248
      %p250 = pneg %p40
      %p251 = pneg %p37
      %p252 = pneg %p61
      %p253 = pneg %p58
      %p254 = pneg %p82
      %p255 = pneg %p79
      %p256 = pneg %p103
      %p257 = pneg %p100
      %p258 = pneg %p124
      %p259 = pneg %p121
      %p260 = pneg %p145
      %p261 = pneg %p142
      %p262 = pneg %p166
      %p263 = pneg %p163
      %p264 = pneg %p192
      %p265 = pneg %p189
      %p266 = scmp.lt.s32.totalorder %s19, 1
      %s267 = scalar_select %p266, %s19, 1
      %s268 = smul.addr %s267, 3
      %s269 = scalar_lea.vmem %s7, %s268
      %s270 = smul.u32 48, %s19
      %p271 = scmp.lt.s32.totalorder %s270, 95
      %s272 = scalar_select %p271, %s270, 95
      %s273 = smul.addr %s272, 8
      %s274 = scalar_lea.vmem %s0, %s273
      %s275 = smul.u32 48, %s19
      %p276 = scmp.lt.s32.totalorder %s19, 1
      %s277 = scalar_select %p276, %s19, 1
      %s278 = smul.addr %s277, 3
      %s279 = scalar_lea.vmem %s7, %s278
      %v280 = vld [vmem:[%s274] sm:$0xff]
      %v281 = vld [vmem:[%s274 + $0x8] sm:$0xff]
      %v282 = vld [vmem:[%s274 + $0x10] sm:$0xff]
      %v283 = vld [vmem:[%s274 + $0x18] sm:$0xff]
      %v284 = vld [vmem:[%s274 + $0x20] sm:$0xff]
      %v285 = vld [vmem:[%s274 + $0x28] sm:$0xff]
      %v286 = vld [vmem:[%s274 + $0x30] sm:$0xff]
      %v287 = vld [vmem:[%s274 + $0x38] sm:$0xff]
      %v288 = vld [vmem:[%s274 + $0x40] sm:$0xff]
      %v289 = vld [vmem:[%s274 + $0x48] sm:$0xff]
      %v290 = vld [vmem:[%s274 + $0x50] sm:$0xff]
      %v291 = vld [vmem:[%s274 + $0x58] sm:$0xff]
      %v292 = vld [vmem:[%s274 + $0x60] sm:$0xff]
      %v293 = vld [vmem:[%s274 + $0x68] sm:$0xff]
      %v294 = vld [vmem:[%s274 + $0x70] sm:$0xff]
      %v295 = vld [vmem:[%s274 + $0x78] sm:$0xff]
      %v296 = vld [vmem:[%s274 + $0x80] sm:$0xff]
      %v297 = vld [vmem:[%s274 + $0x88] sm:$0xff]
      %v298 = vld [vmem:[%s274 + $0x90] sm:$0xff]
      %v299 = vld [vmem:[%s274 + $0x98] sm:$0xff]
      %v300 = vld [vmem:[%s274 + $0xa0] sm:$0xff]
      %v301 = vld [vmem:[%s274 + $0xa8] sm:$0xff]
      %v302 = vld [vmem:[%s274 + $0xb0] sm:$0xff]
      %v303 = vld [vmem:[%s274 + $0xb8] sm:$0xff]
      %v304 = vld [vmem:[%s274 + $0xc0] sm:$0xff]
      %v305 = vld [vmem:[%s274 + $0xc8] sm:$0xff]
      %v306 = vld [vmem:[%s274 + $0xd0] sm:$0xff]
      %v307 = vld [vmem:[%s274 + $0xd8] sm:$0xff]
      %v308 = vld [vmem:[%s274 + $0xe0] sm:$0xff]
      %v309 = vld [vmem:[%s274 + $0xe8] sm:$0xff]
      %v310 = vld [vmem:[%s274 + $0xf0] sm:$0xff]
      %v311 = vld [vmem:[%s274 + $0xf8] sm:$0xff]
      %v312 = vld [vmem:[%s274 + $0x100] sm:$0xff]
      %v313 = vld [vmem:[%s274 + $0x108] sm:$0xff]
      %v314 = vld [vmem:[%s274 + $0x110] sm:$0xff]
      %v315 = vld [vmem:[%s274 + $0x118] sm:$0xff]
      %v316 = vld [vmem:[%s274 + $0x120] sm:$0xff]
      %v317 = vld [vmem:[%s274 + $0x128] sm:$0xff]
      %v318 = vld [vmem:[%s274 + $0x130] sm:$0xff]
      %v319 = vld [vmem:[%s274 + $0x138] sm:$0xff]
      %v320 = vld [vmem:[%s274 + $0x140] sm:$0xff]
      %v321 = vld [vmem:[%s274 + $0x148] sm:$0xff]
      %v322 = vld [vmem:[%s274 + $0x150] sm:$0xff]
      %v323 = vld [vmem:[%s274 + $0x158] sm:$0xff]
      %v324 = vld [vmem:[%s274 + $0x160] sm:$0xff]
      %v325 = vld [vmem:[%s274 + $0x168] sm:$0xff]
      %v326 = vld [vmem:[%s274 + $0x170] sm:$0xff]
      %v327 = vld [vmem:[%s274 + $0x178] sm:$0xff]
      %v328 = vld [vmem:[%s1] sm:$0xff]
      %v329 = vld [vmem:[%s1 + $0x8] sm:$0xff]
      %v330 = vld [vmem:[%s1 + $0x10] sm:$0xff]
      %v331 = vld [vmem:[%s1 + $0x18] sm:$0xff]
      %v332 = vld [vmem:[%s1 + $0x20] sm:$0xff]
      %v333 = vld [vmem:[%s1 + $0x28] sm:$0xff]
      %v334 = vld [vmem:[%s1 + $0x30] sm:$0xff]
      %v335 = vld [vmem:[%s1 + $0x38] sm:$0xff]
      %v336 = vld [vmem:[%s1 + $0x40] sm:$0xff]
      %v337 = vld [vmem:[%s1 + $0x48] sm:$0xff]
      %v338 = vld [vmem:[%s1 + $0x50] sm:$0xf]
      %v339 = vld [vmem:[%s2] sm:$0x1]
      %v341 = vlaneseq
      %v342 = vshrl.u32 %v341, 7
      %v343 = vsub.s32 0, %v342
      %v344 = vrot.slane %v339, %v343
      %vm346 = vcmask 687104
      %v348 = vsel %vm346, %v280, 0
      %v351 = vsel %vm346, %v281, 0
      %v354 = vsel %vm346, %v282, 0
      %v357 = vsel %vm346, %v283, 0
      %v360 = vsel %vm346, %v284, 0
      %v363 = vsel %vm346, %v285, 0
      %v366 = vsel %vm346, %v286, 0
      %v369 = vsel %vm346, %v287, 0
      %v372 = vsel %vm346, %v288, 0
      %v375 = vsel %vm346, %v289, 0
      %v378 = vsel %vm346, %v290, 0
      %v381 = vsel %vm346, %v291, 0
      %v384 = vsel %vm346, %v292, 0
      %v387 = vsel %vm346, %v293, 0
      %v390 = vsel %vm346, %v294, 0
      %v393 = vsel %vm346, %v295, 0
      %v396 = vsel %vm346, %v296, 0
      %v399 = vsel %vm346, %v297, 0
      %v402 = vsel %vm346, %v298, 0
      %v405 = vsel %vm346, %v299, 0
      %v408 = vsel %vm346, %v300, 0
      %v411 = vsel %vm346, %v301, 0
      %v414 = vsel %vm346, %v302, 0
      %v417 = vsel %vm346, %v303, 0
      %v420 = vsel %vm346, %v304, 0
      %v423 = vsel %vm346, %v305, 0
      %v426 = vsel %vm346, %v306, 0
      %v429 = vsel %vm346, %v307, 0
      %v432 = vsel %vm346, %v308, 0
      %v435 = vsel %vm346, %v309, 0
      %v438 = vsel %vm346, %v310, 0
      %v441 = vsel %vm346, %v311, 0
      %v444 = vsel %vm346, %v312, 0
      %v447 = vsel %vm346, %v313, 0
      %v450 = vsel %vm346, %v314, 0
      %v453 = vsel %vm346, %v315, 0
      %v456 = vsel %vm346, %v316, 0
      %v459 = vsel %vm346, %v317, 0
      %v462 = vsel %vm346, %v318, 0
      %v465 = vsel %vm346, %v319, 0
      %v468 = vsel %vm346, %v320, 0
      %v471 = vsel %vm346, %v321, 0
      %v474 = vsel %vm346, %v322, 0
      %v477 = vsel %vm346, %v323, 0
      %v480 = vsel %vm346, %v324, 0
      %v483 = vsel %vm346, %v325, 0
      %v486 = vsel %vm346, %v326, 0
      %v489 = vsel %vm346, %v327, 0
      %vm491 = vcmask 1043456
      %v493 = vsel %vm491, %v338, 0
      %495 = vmatprep.subr.mxu0 0.0
      %496 = vmatpush1.msra.mxu0 0.0
      %497 = vmatprep.subr.mxu0 0.0
      %498 = vmatpush1.msra.mxu0 0.0
      %499 = vmatprep.subr.mxu0 0.0
      %500 = vmatpush1.msra.mxu0 0.0
      %501 = vmatprep.subr.mxu0 0.0
      %502 = vmatpush1.msra.mxu0 0.0
      %503 = vmatprep.subr.mxu0 0.0
      %504 = vmatpush1.msra.mxu0 0.0
      %505 = vmatprep.subr.mxu0 0.0
      %506 = vmatpush1.msra.mxu0 %v493
      %507 = vmatprep.subr.mxu0 0.0
      %508 = vmatpush1.msra.mxu0 %v337
      %509 = vmatprep.subr.mxu0 0.0
      %510 = vmatpush1.msra.mxu0 %v336
      %511 = vmatprep.subr.mxu0 0.0
      %512 = vmatpush1.msra.mxu0 %v335
      %513 = vmatprep.subr.mxu0 0.0
      %514 = vmatpush1.msra.mxu0 %v334
      %515 = vmatprep.subr.mxu0 0.0
      %516 = vmatpush1.msra.mxu0 %v333
      %517 = vmatprep.subr.mxu0 0.0
      %518 = vmatpush1.msra.mxu0 %v332
      %519 = vmatprep.subr.mxu0 0.0
      %520 = vmatpush1.msra.mxu0 %v331
      %521 = vmatprep.subr.mxu0 0.0
      %522 = vmatpush1.msra.mxu0 %v330
      %523 = vmatprep.subr.mxu0 0.0
      %524 = vmatpush1.msra.mxu0 %v329
      %525 = vmatprep.subr.mxu0 0.0
      %526 = vmatpush1.msra.mxu0 %v328
      %527 = vmatprep.subr.mxu0 0.0
      %528 = vmatpush2.msra.mxu0 0.0
      %529 = vmatprep.subr.mxu0 0.0
      %530 = vmatpush2.msra.mxu0 0.0
      %531 = vmatprep.subr.mxu0 0.0
      %532 = vmatpush2.msra.mxu0 0.0
      %533 = vmatprep.subr.mxu0 0.0
      %534 = vmatpush2.msra.mxu0 0.0
      %535 = vmatprep.subr.mxu0 0.0
      %536 = vmatpush2.msra.mxu0 0.0
      %537 = vmatprep.subr.mxu0 0.0
      %538 = vmatpush2.msra.mxu0 0.0
      %539 = vmatprep.subr.mxu0 0.0
      %540 = vmatpush2.msra.mxu0 0.0
      %541 = vmatprep.subr.mxu0 0.0
      %542 = vmatpush2.msra.mxu0 0.0
      %543 = vmatprep.subr.mxu0 0.0
      %544 = vmatpush2.msra.mxu0 0.0
      %545 = vmatprep.subr.mxu0 0.0
      %546 = vmatpush2.msra.mxu0 0.0
      %547 = vmatprep.subr.mxu0 0.0
      %548 = vmatpush2.msra.mxu0 0.0
      %549 = vmatprep.subr.mxu0 0.0
      %550 = vmatpush2.msra.mxu0 0.0
      %551 = vmatprep.subr.mxu0 0.0
      %552 = vmatpush2.msra.mxu0 0.0
      %553 = vmatprep.subr.mxu0 0.0
      %554 = vmatpush2.msra.mxu0 0.0
      %555 = vmatprep.subr.mxu0 0.0
      %556 = vmatpush2.msra.mxu0 0.0
      %557 = vmatprep.subr.mxu0 0.0
      %558 = vmatpush2.msra.mxu0 0.0
      %559 = vmatprep.mubr.f32.mxu0 0.0
      %560 = vmatmul.mubr.f32.gmra.mxu0 %v348
      %v561 = vpop.f32.mrf.mxu0
      %v562 = vadd.f32 %v344, %v561
      %v563 = vpop.f32.mrf.mxu0
      %564 = vmatprep.mubr.f32.mxu0 0.0
      %565 = vmatmul.mubr.f32.gmra.mxu0 %v351
      %v566 = vpop.f32.mrf.mxu0
      %v567 = vadd.f32 %v344, %v566
      %v568 = vpop.f32.mrf.mxu0
      %569 = vmatprep.mubr.f32.mxu0 0.0
      %570 = vmatmul.mubr.f32.gmra.mxu0 %v354
      %v571 = vpop.f32.mrf.mxu0
      %v572 = vadd.f32 %v344, %v571
      %v573 = vpop.f32.mrf.mxu0
      %574 = vmatprep.mubr.f32.mxu0 0.0
      %575 = vmatmul.mubr.f32.gmra.mxu0 %v357
      %v576 = vpop.f32.mrf.mxu0
      %v577 = vadd.f32 %v344, %v576
      %v578 = vpop.f32.mrf.mxu0
      %579 = vmatprep.mubr.f32.mxu0 0.0
      %580 = vmatmul.mubr.f32.gmra.mxu0 %v360
      %v581 = vpop.f32.mrf.mxu0
      %v582 = vadd.f32 %v344, %v581
      %v583 = vpop.f32.mrf.mxu0
      %584 = vmatprep.mubr.f32.mxu0 0.0
      %585 = vmatmul.mubr.f32.gmra.mxu0 %v363
      %v586 = vpop.f32.mrf.mxu0
      %v587 = vadd.f32 %v344, %v586
      %v588 = vpop.f32.mrf.mxu0
      %589 = vmatprep.mubr.f32.mxu0 0.0
      %590 = vmatmul.mubr.f32.gmra.mxu0 %v366
      %v591 = vpop.f32.mrf.mxu0
      %v592 = vadd.f32 %v344, %v591
      %v593 = vpop.f32.mrf.mxu0
      %594 = vmatprep.mubr.f32.mxu0 0.0
      %595 = vmatmul.mubr.f32.gmra.mxu0 %v369
      %v596 = vpop.f32.mrf.mxu0
      %v597 = vadd.f32 %v344, %v596
      %v598 = vpop.f32.mrf.mxu0
      %599 = vmatprep.mubr.f32.mxu0 0.0
      %600 = vmatmul.mubr.f32.gmra.mxu0 %v372
      %v601 = vpop.f32.mrf.mxu0
      %v602 = vadd.f32 %v344, %v601
      %v603 = vpop.f32.mrf.mxu0
      %604 = vmatprep.mubr.f32.mxu0 0.0
      %605 = vmatmul.mubr.f32.gmra.mxu0 %v375
      %v606 = vpop.f32.mrf.mxu0
      %v607 = vadd.f32 %v344, %v606
      %v608 = vpop.f32.mrf.mxu0
      %609 = vmatprep.mubr.f32.mxu0 0.0
      %610 = vmatmul.mubr.f32.gmra.mxu0 %v378
      %v611 = vpop.f32.mrf.mxu0
      %v612 = vadd.f32 %v344, %v611
      %v613 = vpop.f32.mrf.mxu0
      %614 = vmatprep.mubr.f32.mxu0 0.0
      %615 = vmatmul.mubr.f32.gmra.mxu0 %v381
      %v616 = vpop.f32.mrf.mxu0
      %v617 = vadd.f32 %v344, %v616
      %v618 = vpop.f32.mrf.mxu0
      %619 = vmatprep.mubr.f32.mxu0 0.0
      %620 = vmatmul.mubr.f32.gmra.mxu0 %v384
      %v621 = vpop.f32.mrf.mxu0
      %v622 = vadd.f32 %v344, %v621
      %v623 = vpop.f32.mrf.mxu0
      %624 = vmatprep.mubr.f32.mxu0 0.0
      %625 = vmatmul.mubr.f32.gmra.mxu0 %v387
      %v626 = vpop.f32.mrf.mxu0
      %v627 = vadd.f32 %v344, %v626
      %v628 = vpop.f32.mrf.mxu0
      %629 = vmatprep.mubr.f32.mxu0 0.0
      %630 = vmatmul.mubr.f32.gmra.mxu0 %v390
      %v631 = vpop.f32.mrf.mxu0
      %v632 = vadd.f32 %v344, %v631
      %v633 = vpop.f32.mrf.mxu0
      %634 = vmatprep.mubr.f32.mxu0 0.0
      %635 = vmatmul.mubr.f32.gmra.mxu0 %v393
      %v636 = vpop.f32.mrf.mxu0
      %v637 = vadd.f32 %v344, %v636
      %v638 = vpop.f32.mrf.mxu0
      %639 = vmatprep.mubr.f32.mxu0 0.0
      %640 = vmatmul.mubr.f32.gmra.mxu0 %v396
      %v641 = vpop.f32.mrf.mxu0
      %v642 = vadd.f32 %v344, %v641
      %v643 = vpop.f32.mrf.mxu0
      %644 = vmatprep.mubr.f32.mxu0 0.0
      %645 = vmatmul.mubr.f32.gmra.mxu0 %v399
      %v646 = vpop.f32.mrf.mxu0
      %v647 = vadd.f32 %v344, %v646
      %v648 = vpop.f32.mrf.mxu0
      %649 = vmatprep.mubr.f32.mxu0 0.0
      %650 = vmatmul.mubr.f32.gmra.mxu0 %v402
      %v651 = vpop.f32.mrf.mxu0
      %v652 = vadd.f32 %v344, %v651
      %v653 = vpop.f32.mrf.mxu0
      %654 = vmatprep.mubr.f32.mxu0 0.0
      %655 = vmatmul.mubr.f32.gmra.mxu0 %v405
      %v656 = vpop.f32.mrf.mxu0
      %v657 = vadd.f32 %v344, %v656
      %v658 = vpop.f32.mrf.mxu0
      %659 = vmatprep.mubr.f32.mxu0 0.0
      %660 = vmatmul.mubr.f32.gmra.mxu0 %v408
      %v661 = vpop.f32.mrf.mxu0
      %v662 = vadd.f32 %v344, %v661
      %v663 = vpop.f32.mrf.mxu0
      %664 = vmatprep.mubr.f32.mxu0 0.0
      %665 = vmatmul.mubr.f32.gmra.mxu0 %v411
      %v666 = vpop.f32.mrf.mxu0
      %v667 = vadd.f32 %v344, %v666
      %v668 = vpop.f32.mrf.mxu0
      %669 = vmatprep.mubr.f32.mxu0 0.0
      %670 = vmatmul.mubr.f32.gmra.mxu0 %v414
      %v671 = vpop.f32.mrf.mxu0
      %v672 = vadd.f32 %v344, %v671
      %v673 = vpop.f32.mrf.mxu0
      %674 = vmatprep.mubr.f32.mxu0 0.0
      %675 = vmatmul.mubr.f32.gmra.mxu0 %v417
      %v676 = vpop.f32.mrf.mxu0
      %v677 = vadd.f32 %v344, %v676
      %v678 = vpop.f32.mrf.mxu0
      %679 = vmatprep.mubr.f32.mxu0 0.0
      %680 = vmatmul.mubr.f32.gmra.mxu0 %v420
      %v681 = vpop.f32.mrf.mxu0
      %v682 = vadd.f32 %v344, %v681
      %v683 = vpop.f32.mrf.mxu0
      %684 = vmatprep.mubr.f32.mxu0 0.0
      %685 = vmatmul.mubr.f32.gmra.mxu0 %v423
      %v686 = vpop.f32.mrf.mxu0
      %v687 = vadd.f32 %v344, %v686
      %v688 = vpop.f32.mrf.mxu0
      %689 = vmatprep.mubr.f32.mxu0 0.0
      %690 = vmatmul.mubr.f32.gmra.mxu0 %v426
      %v691 = vpop.f32.mrf.mxu0
      %v692 = vadd.f32 %v344, %v691
      %v693 = vpop.f32.mrf.mxu0
      %694 = vmatprep.mubr.f32.mxu0 0.0
      %695 = vmatmul.mubr.f32.gmra.mxu0 %v429
      %v696 = vpop.f32.mrf.mxu0
      %v697 = vadd.f32 %v344, %v696
      %v698 = vpop.f32.mrf.mxu0
      %699 = vmatprep.mubr.f32.mxu0 0.0
      %700 = vmatmul.mubr.f32.gmra.mxu0 %v432
      %v701 = vpop.f32.mrf.mxu0
      %v702 = vadd.f32 %v344, %v701
      %v703 = vpop.f32.mrf.mxu0
      %704 = vmatprep.mubr.f32.mxu0 0.0
      %705 = vmatmul.mubr.f32.gmra.mxu0 %v435
      %v706 = vpop.f32.mrf.mxu0
      %v707 = vadd.f32 %v344, %v706
      %v708 = vpop.f32.mrf.mxu0
      %709 = vmatprep.mubr.f32.mxu0 0.0
      %710 = vmatmul.mubr.f32.gmra.mxu0 %v438
      %v711 = vpop.f32.mrf.mxu0
      %v712 = vadd.f32 %v344, %v711
      %v713 = vpop.f32.mrf.mxu0
      %714 = vmatprep.mubr.f32.mxu0 0.0
      %715 = vmatmul.mubr.f32.gmra.mxu0 %v441
      %v716 = vpop.f32.mrf.mxu0
      %v717 = vadd.f32 %v344, %v716
      %v718 = vpop.f32.mrf.mxu0
      %719 = vmatprep.mubr.f32.mxu0 0.0
      %720 = vmatmul.mubr.f32.gmra.mxu0 %v444
      %v721 = vpop.f32.mrf.mxu0
      %v722 = vadd.f32 %v344, %v721
      %v723 = vpop.f32.mrf.mxu0
      %724 = vmatprep.mubr.f32.mxu0 0.0
      %725 = vmatmul.mubr.f32.gmra.mxu0 %v447
      %v726 = vpop.f32.mrf.mxu0
      %v727 = vadd.f32 %v344, %v726
      %v728 = vpop.f32.mrf.mxu0
      %729 = vmatprep.mubr.f32.mxu0 0.0
      %730 = vmatmul.mubr.f32.gmra.mxu0 %v450
      %v731 = vpop.f32.mrf.mxu0
      %v732 = vadd.f32 %v344, %v731
      %v733 = vpop.f32.mrf.mxu0
      %734 = vmatprep.mubr.f32.mxu0 0.0
      %735 = vmatmul.mubr.f32.gmra.mxu0 %v453
      %v736 = vpop.f32.mrf.mxu0
      %v737 = vadd.f32 %v344, %v736
      %v738 = vpop.f32.mrf.mxu0
      %739 = vmatprep.mubr.f32.mxu0 0.0
      %740 = vmatmul.mubr.f32.gmra.mxu0 %v456
      %v741 = vpop.f32.mrf.mxu0
      %v742 = vadd.f32 %v344, %v741
      %v743 = vpop.f32.mrf.mxu0
      %744 = vmatprep.mubr.f32.mxu0 0.0
      %745 = vmatmul.mubr.f32.gmra.mxu0 %v459
      %v746 = vpop.f32.mrf.mxu0
      %v747 = vadd.f32 %v344, %v746
      %v748 = vpop.f32.mrf.mxu0
      %749 = vmatprep.mubr.f32.mxu0 0.0
      %750 = vmatmul.mubr.f32.gmra.mxu0 %v462
      %v751 = vpop.f32.mrf.mxu0
      %v752 = vadd.f32 %v344, %v751
      %v753 = vpop.f32.mrf.mxu0
      %754 = vmatprep.mubr.f32.mxu0 0.0
      %755 = vmatmul.mubr.f32.gmra.mxu0 %v465
      %v756 = vpop.f32.mrf.mxu0
      %v757 = vadd.f32 %v344, %v756
      %v758 = vpop.f32.mrf.mxu0
      %759 = vmatprep.mubr.f32.mxu0 0.0
      %760 = vmatmul.mubr.f32.gmra.mxu0 %v468
      %v761 = vpop.f32.mrf.mxu0
      %v762 = vadd.f32 %v344, %v761
      %v763 = vpop.f32.mrf.mxu0
      %764 = vmatprep.mubr.f32.mxu0 0.0
      %765 = vmatmul.mubr.f32.gmra.mxu0 %v471
      %v766 = vpop.f32.mrf.mxu0
      %v767 = vadd.f32 %v344, %v766
      %v768 = vpop.f32.mrf.mxu0
      %769 = vmatprep.mubr.f32.mxu0 0.0
      %770 = vmatmul.mubr.f32.gmra.mxu0 %v474
      %v771 = vpop.f32.mrf.mxu0
      %v772 = vadd.f32 %v344, %v771
      %v773 = vpop.f32.mrf.mxu0
      %774 = vmatprep.mubr.f32.mxu0 0.0
      %775 = vmatmul.mubr.f32.gmra.mxu0 %v477
      %v776 = vpop.f32.mrf.mxu0
      %v777 = vadd.f32 %v344, %v776
      %v778 = vpop.f32.mrf.mxu0
      %779 = vmatprep.mubr.f32.mxu0 0.0
      %780 = vmatmul.mubr.f32.gmra.mxu0 %v480
      %v781 = vpop.f32.mrf.mxu0
      %v782 = vadd.f32 %v344, %v781
      %v783 = vpop.f32.mrf.mxu0
      %784 = vmatprep.mubr.f32.mxu0 0.0
      %785 = vmatmul.mubr.f32.gmra.mxu0 %v483
      %v786 = vpop.f32.mrf.mxu0
      %v787 = vadd.f32 %v344, %v786
      %v788 = vpop.f32.mrf.mxu0
      %789 = vmatprep.mubr.f32.mxu0 0.0
      %790 = vmatmul.mubr.f32.gmra.mxu0 %v486
      %v791 = vpop.f32.mrf.mxu0
      %v792 = vadd.f32 %v344, %v791
      %v793 = vpop.f32.mrf.mxu0
      %794 = vmatprep.mubr.f32.mxu0 0.0
      %795 = vmatmul.mubr.f32.gmra.mxu0 %v489
      %v796 = vpop.f32.mrf.mxu0
      %v797 = vadd.f32 %v344, %v796
      %v798 = vpop.f32.mrf.mxu0
      %799 = vdwg.mxu0
      %v800 = vmax.f32 %v562, 0.0
      %v801 = vmax.f32 %v567, 0.0
      %v802 = vmax.f32 %v572, 0.0
      %v803 = vmax.f32 %v577, 0.0
      %v804 = vmax.f32 %v582, 0.0
      %v805 = vmax.f32 %v587, 0.0
      %v806 = vmax.f32 %v592, 0.0
      %v807 = vmax.f32 %v597, 0.0
      %v808 = vmax.f32 %v602, 0.0
      %v809 = vmax.f32 %v607, 0.0
      %v810 = vmax.f32 %v612, 0.0
      %v811 = vmax.f32 %v617, 0.0
      %v812 = vmax.f32 %v622, 0.0
      %v813 = vmax.f32 %v627, 0.0
      %v814 = vmax.f32 %v632, 0.0
      %v815 = vmax.f32 %v637, 0.0
      %v816 = vmax.f32 %v642, 0.0
      %v817 = vmax.f32 %v647, 0.0
      %v818 = vmax.f32 %v652, 0.0
      %v819 = vmax.f32 %v657, 0.0
      %v820 = vmax.f32 %v662, 0.0
      %v821 = vmax.f32 %v667, 0.0
      %v822 = vmax.f32 %v672, 0.0
      %v823 = vmax.f32 %v677, 0.0
      %v824 = vmax.f32 %v682, 0.0
      %v825 = vmax.f32 %v687, 0.0
      %v826 = vmax.f32 %v692, 0.0
      %v827 = vmax.f32 %v697, 0.0
      %v828 = vmax.f32 %v702, 0.0
      %v829 = vmax.f32 %v707, 0.0
      %v830 = vmax.f32 %v712, 0.0
      %v831 = vmax.f32 %v717, 0.0
      %v832 = vmax.f32 %v722, 0.0
      %v833 = vmax.f32 %v727, 0.0
      %v834 = vmax.f32 %v732, 0.0
      %v835 = vmax.f32 %v737, 0.0
      %v836 = vmax.f32 %v742, 0.0
      %v837 = vmax.f32 %v747, 0.0
      %v838 = vmax.f32 %v752, 0.0
      %v839 = vmax.f32 %v757, 0.0
      %v840 = vmax.f32 %v762, 0.0
      %v841 = vmax.f32 %v767, 0.0
      %v842 = vmax.f32 %v772, 0.0
      %v843 = vmax.f32 %v777, 0.0
      %v844 = vmax.f32 %v782, 0.0
      %v845 = vmax.f32 %v787, 0.0
      %v846 = vmax.f32 %v792, 0.0
      %v847 = vmax.f32 %v797, 0.0
      %v848 = vld [vmem:[%s3] sm:$0xff]
      %v849 = vld [vmem:[%s3 + $0x8] sm:$0xff]
      %v850 = vld [vmem:[%s3 + $0x10] sm:$0xff]
      %v851 = vld [vmem:[%s3 + $0x18] sm:$0xff]
      %v852 = vld [vmem:[%s3 + $0x20] sm:$0xff]
      %v853 = vld [vmem:[%s3 + $0x28] sm:$0xff]
      %v854 = vld [vmem:[%s3 + $0x30] sm:$0xff]
      %v855 = vld [vmem:[%s3 + $0x38] sm:$0xff]
      %v856 = vld [vmem:[%s3 + $0x40] sm:$0xff]
      %v857 = vld [vmem:[%s3 + $0x48] sm:$0xff]
      %v858 = vld [vmem:[%s3 + $0x50] sm:$0xff]
      %v859 = vld [vmem:[%s3 + $0x58] sm:$0xff]
      %v860 = vld [vmem:[%s3 + $0x60] sm:$0xff]
      %v861 = vld [vmem:[%s3 + $0x68] sm:$0xff]
      %v862 = vld [vmem:[%s3 + $0x70] sm:$0xff]
      %v863 = vld [vmem:[%s3 + $0x78] sm:$0xff]
      %v864 = vld [vmem:[%s4] sm:$0x1]
      %v866 = vlaneseq
      %v867 = vshrl.u32 %v866, 7
      %v868 = vsub.s32 0, %v867
      %v869 = vrot.slane %v864, %v868
      %871 = vmatprep.subr.mxu0 0.0
      %872 = vmatpush1.msra.mxu0 %v863
      %873 = vmatprep.subr.mxu0 0.0
      %874 = vmatpush1.msra.mxu0 %v862
      %875 = vmatprep.subr.mxu0 0.0
      %876 = vmatpush1.msra.mxu0 %v861
      %877 = vmatprep.subr.mxu0 0.0
      %878 = vmatpush1.msra.mxu0 %v860
      %879 = vmatprep.subr.mxu0 0.0
      %880 = vmatpush1.msra.mxu0 %v859
      %881 = vmatprep.subr.mxu0 0.0
      %882 = vmatpush1.msra.mxu0 %v858
      %883 = vmatprep.subr.mxu0 0.0
      %884 = vmatpush1.msra.mxu0 %v857
      %885 = vmatprep.subr.mxu0 0.0
      %886 = vmatpush1.msra.mxu0 %v856
      %887 = vmatprep.subr.mxu0 0.0
      %888 = vmatpush1.msra.mxu0 %v855
      %889 = vmatprep.subr.mxu0 0.0
      %890 = vmatpush1.msra.mxu0 %v854
      %891 = vmatprep.subr.mxu0 0.0
      %892 = vmatpush1.msra.mxu0 %v853
      %893 = vmatprep.subr.mxu0 0.0
      %894 = vmatpush1.msra.mxu0 %v852
      %895 = vmatprep.subr.mxu0 0.0
      %896 = vmatpush1.msra.mxu0 %v851
      %897 = vmatprep.subr.mxu0 0.0
      %898 = vmatpush1.msra.mxu0 %v850
      %899 = vmatprep.subr.mxu0 0.0
      %900 = vmatpush1.msra.mxu0 %v849
      %901 = vmatprep.subr.mxu0 0.0
      %902 = vmatpush1.msra.mxu0 %v848
      %903 = vmatprep.subr.mxu0 0.0
      %904 = vmatpush2.msra.mxu0 0.0
      %905 = vmatprep.subr.mxu0 0.0
      %906 = vmatpush2.msra.mxu0 0.0
      %907 = vmatprep.subr.mxu0 0.0
      %908 = vmatpush2.msra.mxu0 0.0
      %909 = vmatprep.subr.mxu0 0.0
      %910 = vmatpush2.msra.mxu0 0.0
      %911 = vmatprep.subr.mxu0 0.0
      %912 = vmatpush2.msra.mxu0 0.0
      %913 = vmatprep.subr.mxu0 0.0
      %914 = vmatpush2.msra.mxu0 0.0
      %915 = vmatprep.subr.mxu0 0.0
      %916 = vmatpush2.msra.mxu0 0.0
      %917 = vmatprep.subr.mxu0 0.0
      %918 = vmatpush2.msra.mxu0 0.0
      %919 = vmatprep.subr.mxu0 0.0
      %920 = vmatpush2.msra.mxu0 0.0
      %921 = vmatprep.subr.mxu0 0.0
      %922 = vmatpush2.msra.mxu0 0.0
      %923 = vmatprep.subr.mxu0 0.0
      %924 = vmatpush2.msra.mxu0 0.0
      %925 = vmatprep.subr.mxu0 0.0
      %926 = vmatpush2.msra.mxu0 0.0
      %927 = vmatprep.subr.mxu0 0.0
      %928 = vmatpush2.msra.mxu0 0.0
      %929 = vmatprep.subr.mxu0 0.0
      %930 = vmatpush2.msra.mxu0 0.0
      %931 = vmatprep.subr.mxu0 0.0
      %932 = vmatpush2.msra.mxu0 0.0
      %933 = vmatprep.subr.mxu0 0.0
      %934 = vmatpush2.msra.mxu0 0.0
      %935 = vmatprep.mubr.f32.mxu0 0.0
      %936 = vmatmul.mubr.f32.gmra.mxu0 %v800
      %v937 = vpop.f32.mrf.mxu0
      %v938 = vadd.f32 %v869, %v937
      %v939 = vpop.f32.mrf.mxu0
      %940 = vmatprep.mubr.f32.mxu0 0.0
      %941 = vmatmul.mubr.f32.gmra.mxu0 %v801
      %v942 = vpop.f32.mrf.mxu0
      %v943 = vadd.f32 %v869, %v942
      %v944 = vpop.f32.mrf.mxu0
      %945 = vmatprep.mubr.f32.mxu0 0.0
      %946 = vmatmul.mubr.f32.gmra.mxu0 %v802
      %v947 = vpop.f32.mrf.mxu0
      %v948 = vadd.f32 %v869, %v947
      %v949 = vpop.f32.mrf.mxu0
      %950 = vmatprep.mubr.f32.mxu0 0.0
      %951 = vmatmul.mubr.f32.gmra.mxu0 %v803
      %v952 = vpop.f32.mrf.mxu0
      %v953 = vadd.f32 %v869, %v952
      %v954 = vpop.f32.mrf.mxu0
      %955 = vmatprep.mubr.f32.mxu0 0.0
      %956 = vmatmul.mubr.f32.gmra.mxu0 %v804
      %v957 = vpop.f32.mrf.mxu0
      %v958 = vadd.f32 %v869, %v957
      %v959 = vpop.f32.mrf.mxu0
      %960 = vmatprep.mubr.f32.mxu0 0.0
      %961 = vmatmul.mubr.f32.gmra.mxu0 %v805
      %v962 = vpop.f32.mrf.mxu0
      %v963 = vadd.f32 %v869, %v962
      %v964 = vpop.f32.mrf.mxu0
      %965 = vmatprep.mubr.f32.mxu0 0.0
      %966 = vmatmul.mubr.f32.gmra.mxu0 %v806
      %v967 = vpop.f32.mrf.mxu0
      %v968 = vadd.f32 %v869, %v967
      %v969 = vpop.f32.mrf.mxu0
      %970 = vmatprep.mubr.f32.mxu0 0.0
      %971 = vmatmul.mubr.f32.gmra.mxu0 %v807
      %v972 = vpop.f32.mrf.mxu0
      %v973 = vadd.f32 %v869, %v972
      %v974 = vpop.f32.mrf.mxu0
      %975 = vmatprep.mubr.f32.mxu0 0.0
      %976 = vmatmul.mubr.f32.gmra.mxu0 %v808
      %v977 = vpop.f32.mrf.mxu0
      %v978 = vadd.f32 %v869, %v977
      %v979 = vpop.f32.mrf.mxu0
      %980 = vmatprep.mubr.f32.mxu0 0.0
      %981 = vmatmul.mubr.f32.gmra.mxu0 %v809
      %v982 = vpop.f32.mrf.mxu0
      %v983 = vadd.f32 %v869, %v982
      %v984 = vpop.f32.mrf.mxu0
      %985 = vmatprep.mubr.f32.mxu0 0.0
      %986 = vmatmul.mubr.f32.gmra.mxu0 %v810
      %v987 = vpop.f32.mrf.mxu0
      %v988 = vadd.f32 %v869, %v987
      %v989 = vpop.f32.mrf.mxu0
      %990 = vmatprep.mubr.f32.mxu0 0.0
      %991 = vmatmul.mubr.f32.gmra.mxu0 %v811
      %v992 = vpop.f32.mrf.mxu0
      %v993 = vadd.f32 %v869, %v992
      %v994 = vpop.f32.mrf.mxu0
      %995 = vmatprep.mubr.f32.mxu0 0.0
      %996 = vmatmul.mubr.f32.gmra.mxu0 %v812
      %v997 = vpop.f32.mrf.mxu0
      %v998 = vadd.f32 %v869, %v997
      %v999 = vpop.f32.mrf.mxu0
      %1000 = vmatprep.mubr.f32.mxu0 0.0
      %1001 = vmatmul.mubr.f32.gmra.mxu0 %v813
      %v1002 = vpop.f32.mrf.mxu0
      %v1003 = vadd.f32 %v869, %v1002
      %v1004 = vpop.f32.mrf.mxu0
      %1005 = vmatprep.mubr.f32.mxu0 0.0
      %1006 = vmatmul.mubr.f32.gmra.mxu0 %v814
      %v1007 = vpop.f32.mrf.mxu0
      %v1008 = vadd.f32 %v869, %v1007
      %v1009 = vpop.f32.mrf.mxu0
      %1010 = vmatprep.mubr.f32.mxu0 0.0
      %1011 = vmatmul.mubr.f32.gmra.mxu0 %v815
      %v1012 = vpop.f32.mrf.mxu0
      %v1013 = vadd.f32 %v869, %v1012
      %v1014 = vpop.f32.mrf.mxu0
      %1015 = vmatprep.mubr.f32.mxu0 0.0
      %1016 = vmatmul.mubr.f32.gmra.mxu0 %v816
      %v1017 = vpop.f32.mrf.mxu0
      %v1018 = vadd.f32 %v869, %v1017
      %v1019 = vpop.f32.mrf.mxu0
      %1020 = vmatprep.mubr.f32.mxu0 0.0
      %1021 = vmatmul.mubr.f32.gmra.mxu0 %v817
      %v1022 = vpop.f32.mrf.mxu0
      %v1023 = vadd.f32 %v869, %v1022
      %v1024 = vpop.f32.mrf.mxu0
      %1025 = vmatprep.mubr.f32.mxu0 0.0
      %1026 = vmatmul.mubr.f32.gmra.mxu0 %v818
      %v1027 = vpop.f32.mrf.mxu0
      %v1028 = vadd.f32 %v869, %v1027
      %v1029 = vpop.f32.mrf.mxu0
      %1030 = vmatprep.mubr.f32.mxu0 0.0
      %1031 = vmatmul.mubr.f32.gmra.mxu0 %v819
      %v1032 = vpop.f32.mrf.mxu0
      %v1033 = vadd.f32 %v869, %v1032
      %v1034 = vpop.f32.mrf.mxu0
      %1035 = vmatprep.mubr.f32.mxu0 0.0
      %1036 = vmatmul.mubr.f32.gmra.mxu0 %v820
      %v1037 = vpop.f32.mrf.mxu0
      %v1038 = vadd.f32 %v869, %v1037
      %v1039 = vpop.f32.mrf.mxu0
      %1040 = vmatprep.mubr.f32.mxu0 0.0
      %1041 = vmatmul.mubr.f32.gmra.mxu0 %v821
      %v1042 = vpop.f32.mrf.mxu0
      %v1043 = vadd.f32 %v869, %v1042
      %v1044 = vpop.f32.mrf.mxu0
      %1045 = vmatprep.mubr.f32.mxu0 0.0
      %1046 = vmatmul.mubr.f32.gmra.mxu0 %v822
      %v1047 = vpop.f32.mrf.mxu0
      %v1048 = vadd.f32 %v869, %v1047
      %v1049 = vpop.f32.mrf.mxu0
      %1050 = vmatprep.mubr.f32.mxu0 0.0
      %1051 = vmatmul.mubr.f32.gmra.mxu0 %v823
      %v1052 = vpop.f32.mrf.mxu0
      %v1053 = vadd.f32 %v869, %v1052
      %v1054 = vpop.f32.mrf.mxu0
      %1055 = vmatprep.mubr.f32.mxu0 0.0
      %1056 = vmatmul.mubr.f32.gmra.mxu0 %v824
      %v1057 = vpop.f32.mrf.mxu0
      %v1058 = vadd.f32 %v869, %v1057
      %v1059 = vpop.f32.mrf.mxu0
      %1060 = vmatprep.mubr.f32.mxu0 0.0
      %1061 = vmatmul.mubr.f32.gmra.mxu0 %v825
      %v1062 = vpop.f32.mrf.mxu0
      %v1063 = vadd.f32 %v869, %v1062
      %v1064 = vpop.f32.mrf.mxu0
      %1065 = vmatprep.mubr.f32.mxu0 0.0
      %1066 = vmatmul.mubr.f32.gmra.mxu0 %v826
      %v1067 = vpop.f32.mrf.mxu0
      %v1068 = vadd.f32 %v869, %v1067
      %v1069 = vpop.f32.mrf.mxu0
      %1070 = vmatprep.mubr.f32.mxu0 0.0
      %1071 = vmatmul.mubr.f32.gmra.mxu0 %v827
      %v1072 = vpop.f32.mrf.mxu0
      %v1073 = vadd.f32 %v869, %v1072
      %v1074 = vpop.f32.mrf.mxu0
      %1075 = vmatprep.mubr.f32.mxu0 0.0
      %1076 = vmatmul.mubr.f32.gmra.mxu0 %v828
      %v1077 = vpop.f32.mrf.mxu0
      %v1078 = vadd.f32 %v869, %v1077
      %v1079 = vpop.f32.mrf.mxu0
      %1080 = vmatprep.mubr.f32.mxu0 0.0
      %1081 = vmatmul.mubr.f32.gmra.mxu0 %v829
      %v1082 = vpop.f32.mrf.mxu0
      %v1083 = vadd.f32 %v869, %v1082
      %v1084 = vpop.f32.mrf.mxu0
      %1085 = vmatprep.mubr.f32.mxu0 0.0
      %1086 = vmatmul.mubr.f32.gmra.mxu0 %v830
      %v1087 = vpop.f32.mrf.mxu0
      %v1088 = vadd.f32 %v869, %v1087
      %v1089 = vpop.f32.mrf.mxu0
      %1090 = vmatprep.mubr.f32.mxu0 0.0
      %1091 = vmatmul.mubr.f32.gmra.mxu0 %v831
      %v1092 = vpop.f32.mrf.mxu0
      %v1093 = vadd.f32 %v869, %v1092
      %v1094 = vpop.f32.mrf.mxu0
      %1095 = vmatprep.mubr.f32.mxu0 0.0
      %1096 = vmatmul.mubr.f32.gmra.mxu0 %v832
      %v1097 = vpop.f32.mrf.mxu0
      %v1098 = vadd.f32 %v869, %v1097
      %v1099 = vpop.f32.mrf.mxu0
      %1100 = vmatprep.mubr.f32.mxu0 0.0
      %1101 = vmatmul.mubr.f32.gmra.mxu0 %v833
      %v1102 = vpop.f32.mrf.mxu0
      %v1103 = vadd.f32 %v869, %v1102
      %v1104 = vpop.f32.mrf.mxu0
      %1105 = vmatprep.mubr.f32.mxu0 0.0
      %1106 = vmatmul.mubr.f32.gmra.mxu0 %v834
      %v1107 = vpop.f32.mrf.mxu0
      %v1108 = vadd.f32 %v869, %v1107
      %v1109 = vpop.f32.mrf.mxu0
      %1110 = vmatprep.mubr.f32.mxu0 0.0
      %1111 = vmatmul.mubr.f32.gmra.mxu0 %v835
      %v1112 = vpop.f32.mrf.mxu0
      %v1113 = vadd.f32 %v869, %v1112
      %v1114 = vpop.f32.mrf.mxu0
      %1115 = vmatprep.mubr.f32.mxu0 0.0
      %1116 = vmatmul.mubr.f32.gmra.mxu0 %v836
      %v1117 = vpop.f32.mrf.mxu0
      %v1118 = vadd.f32 %v869, %v1117
      %v1119 = vpop.f32.mrf.mxu0
      %1120 = vmatprep.mubr.f32.mxu0 0.0
      %1121 = vmatmul.mubr.f32.gmra.mxu0 %v837
      %v1122 = vpop.f32.mrf.mxu0
      %v1123 = vadd.f32 %v869, %v1122
      %v1124 = vpop.f32.mrf.mxu0
      %1125 = vmatprep.mubr.f32.mxu0 0.0
      %1126 = vmatmul.mubr.f32.gmra.mxu0 %v838
      %v1127 = vpop.f32.mrf.mxu0
      %v1128 = vadd.f32 %v869, %v1127
      %v1129 = vpop.f32.mrf.mxu0
      %1130 = vmatprep.mubr.f32.mxu0 0.0
      %1131 = vmatmul.mubr.f32.gmra.mxu0 %v839
      %v1132 = vpop.f32.mrf.mxu0
      %v1133 = vadd.f32 %v869, %v1132
      %v1134 = vpop.f32.mrf.mxu0
      %1135 = vmatprep.mubr.f32.mxu0 0.0
      %1136 = vmatmul.mubr.f32.gmra.mxu0 %v840
      %v1137 = vpop.f32.mrf.mxu0
      %v1138 = vadd.f32 %v869, %v1137
      %v1139 = vpop.f32.mrf.mxu0
      %1140 = vmatprep.mubr.f32.mxu0 0.0
      %1141 = vmatmul.mubr.f32.gmra.mxu0 %v841
      %v1142 = vpop.f32.mrf.mxu0
      %v1143 = vadd.f32 %v869, %v1142
      %v1144 = vpop.f32.mrf.mxu0
      %1145 = vmatprep.mubr.f32.mxu0 0.0
      %1146 = vmatmul.mubr.f32.gmra.mxu0 %v842
      %v1147 = vpop.f32.mrf.mxu0
      %v1148 = vadd.f32 %v869, %v1147
      %v1149 = vpop.f32.mrf.mxu0
      %1150 = vmatprep.mubr.f32.mxu0 0.0
      %1151 = vmatmul.mubr.f32.gmra.mxu0 %v843
      %v1152 = vpop.f32.mrf.mxu0
      %v1153 = vadd.f32 %v869, %v1152
      %v1154 = vpop.f32.mrf.mxu0
      %1155 = vmatprep.mubr.f32.mxu0 0.0
      %1156 = vmatmul.mubr.f32.gmra.mxu0 %v844
      %v1157 = vpop.f32.mrf.mxu0
      %v1158 = vadd.f32 %v869, %v1157
      %v1159 = vpop.f32.mrf.mxu0
      %1160 = vmatprep.mubr.f32.mxu0 0.0
      %1161 = vmatmul.mubr.f32.gmra.mxu0 %v845
      %v1162 = vpop.f32.mrf.mxu0
      %v1163 = vadd.f32 %v869, %v1162
      %v1164 = vpop.f32.mrf.mxu0
      %1165 = vmatprep.mubr.f32.mxu0 0.0
      %1166 = vmatmul.mubr.f32.gmra.mxu0 %v846
      %v1167 = vpop.f32.mrf.mxu0
      %v1168 = vadd.f32 %v869, %v1167
      %v1169 = vpop.f32.mrf.mxu0
      %1170 = vmatprep.mubr.f32.mxu0 0.0
      %1171 = vmatmul.mubr.f32.gmra.mxu0 %v847
      %v1172 = vpop.f32.mrf.mxu0
      %v1173 = vadd.f32 %v869, %v1172
      %v1174 = vpop.f32.mrf.mxu0
      %1175 = vdwg.mxu0
      %v1176 = vmax.f32 %v938, 0.0
      %v1177 = vmax.f32 %v943, 0.0
      %v1178 = vmax.f32 %v948, 0.0
      %v1179 = vmax.f32 %v953, 0.0
      %v1180 = vmax.f32 %v958, 0.0
      %v1181 = vmax.f32 %v963, 0.0
      %v1182 = vmax.f32 %v968, 0.0
      %v1183 = vmax.f32 %v973, 0.0
      %v1184 = vmax.f32 %v978, 0.0
      %v1185 = vmax.f32 %v983, 0.0
      %v1186 = vmax.f32 %v988, 0.0
      %v1187 = vmax.f32 %v993, 0.0
      %v1188 = vmax.f32 %v998, 0.0
      %v1189 = vmax.f32 %v1003, 0.0
      %v1190 = vmax.f32 %v1008, 0.0
      %v1191 = vmax.f32 %v1013, 0.0
      %v1192 = vmax.f32 %v1018, 0.0
      %v1193 = vmax.f32 %v1023, 0.0
      %v1194 = vmax.f32 %v1028, 0.0
      %v1195 = vmax.f32 %v1033, 0.0
      %v1196 = vmax.f32 %v1038, 0.0
      %v1197 = vmax.f32 %v1043, 0.0
      %v1198 = vmax.f32 %v1048, 0.0
      %v1199 = vmax.f32 %v1053, 0.0
      %v1200 = vmax.f32 %v1058, 0.0
      %v1201 = vmax.f32 %v1063, 0.0
      %v1202 = vmax.f32 %v1068, 0.0
      %v1203 = vmax.f32 %v1073, 0.0
      %v1204 = vmax.f32 %v1078, 0.0
      %v1205 = vmax.f32 %v1083, 0.0
      %v1206 = vmax.f32 %v1088, 0.0
      %v1207 = vmax.f32 %v1093, 0.0
      %v1208 = vmax.f32 %v1098, 0.0
      %v1209 = vmax.f32 %v1103, 0.0
      %v1210 = vmax.f32 %v1108, 0.0
      %v1211 = vmax.f32 %v1113, 0.0
      %v1212 = vmax.f32 %v1118, 0.0
      %v1213 = vmax.f32 %v1123, 0.0
      %v1214 = vmax.f32 %v1128, 0.0
      %v1215 = vmax.f32 %v1133, 0.0
      %v1216 = vmax.f32 %v1138, 0.0
      %v1217 = vmax.f32 %v1143, 0.0
      %v1218 = vmax.f32 %v1148, 0.0
      %v1219 = vmax.f32 %v1153, 0.0
      %v1220 = vmax.f32 %v1158, 0.0
      %v1221 = vmax.f32 %v1163, 0.0
      %v1222 = vmax.f32 %v1168, 0.0
      %v1223 = vmax.f32 %v1173, 0.0
      %v1224 = vld [vmem:[%s5] sm:$0xff]
      %1225 = vmatprep.subr.mxu0 0.0
      %1226 = vmatpush1.xpose.msra.mxu0 %v1191
      %1227 = vmatprep.subr.mxu0 0.0
      %1228 = vmatpush1.xpose.msra.mxu0 %v1190
      %1229 = vmatprep.subr.mxu0 0.0
      %1230 = vmatpush1.xpose.msra.mxu0 %v1189
      %1231 = vmatprep.subr.mxu0 0.0
      %1232 = vmatpush1.xpose.msra.mxu0 %v1188
      %1233 = vmatprep.subr.mxu0 0.0
      %1234 = vmatpush1.xpose.msra.mxu0 %v1187
      %1235 = vmatprep.subr.mxu0 0.0
      %1236 = vmatpush1.xpose.msra.mxu0 %v1186
      %1237 = vmatprep.subr.mxu0 0.0
      %1238 = vmatpush1.xpose.msra.mxu0 %v1185
      %1239 = vmatprep.subr.mxu0 0.0
      %1240 = vmatpush1.xpose.msra.mxu0 %v1184
      %1241 = vmatprep.subr.mxu0 0.0
      %1242 = vmatpush1.xpose.msra.mxu0 %v1183
      %1243 = vmatprep.subr.mxu0 0.0
      %1244 = vmatpush1.xpose.msra.mxu0 %v1182
      %1245 = vmatprep.subr.mxu0 0.0
      %1246 = vmatpush1.xpose.msra.mxu0 %v1181
      %1247 = vmatprep.subr.mxu0 0.0
      %1248 = vmatpush1.xpose.msra.mxu0 %v1180
      %1249 = vmatprep.subr.mxu0 0.0
      %1250 = vmatpush1.xpose.msra.mxu0 %v1179
      %1251 = vmatprep.subr.mxu0 0.0
      %1252 = vmatpush1.xpose.msra.mxu0 %v1178
      %1253 = vmatprep.subr.mxu0 0.0
      %1254 = vmatpush1.xpose.msra.mxu0 %v1177
      %1255 = vmatprep.subr.mxu0 0.0
      %1256 = vmatpush1.xpose.msra.mxu0 %v1176
      %1257 = vmatprep.subr.mxu0 0.0
      %1258 = vmatpush2.xpose.msra.mxu0 %v1207
      %1259 = vmatprep.subr.mxu0 0.0
      %1260 = vmatpush2.xpose.msra.mxu0 %v1206
      %1261 = vmatprep.subr.mxu0 0.0
      %1262 = vmatpush2.xpose.msra.mxu0 %v1205
      %1263 = vmatprep.subr.mxu0 0.0
      %1264 = vmatpush2.xpose.msra.mxu0 %v1204
      %1265 = vmatprep.subr.mxu0 0.0
      %1266 = vmatpush2.xpose.msra.mxu0 %v1203
      %1267 = vmatprep.subr.mxu0 0.0
      %1268 = vmatpush2.xpose.msra.mxu0 %v1202
      %1269 = vmatprep.subr.mxu0 0.0
      %1270 = vmatpush2.xpose.msra.mxu0 %v1201
      %1271 = vmatprep.subr.mxu0 0.0
      %1272 = vmatpush2.xpose.msra.mxu0 %v1200
      %1273 = vmatprep.subr.mxu0 0.0
      %1274 = vmatpush2.xpose.msra.mxu0 %v1199
      %1275 = vmatprep.subr.mxu0 0.0
      %1276 = vmatpush2.xpose.msra.mxu0 %v1198
      %1277 = vmatprep.subr.mxu0 0.0
      %1278 = vmatpush2.xpose.msra.mxu0 %v1197
      %1279 = vmatprep.subr.mxu0 0.0
      %1280 = vmatpush2.xpose.msra.mxu0 %v1196
      %1281 = vmatprep.subr.mxu0 0.0
      %1282 = vmatpush2.xpose.msra.mxu0 %v1195
      %1283 = vmatprep.subr.mxu0 0.0
      %1284 = vmatpush2.xpose.msra.mxu0 %v1194
      %1285 = vmatprep.subr.mxu0 0.0
      %1286 = vmatpush2.xpose.msra.mxu0 %v1193
      %1287 = vmatprep.subr.mxu0 0.0
      %1288 = vmatpush2.xpose.msra.mxu0 %v1192
      %1289 = vmatprep.mubr.f32.mxu0 0.0
      %1290 = vmatmul.mubr.f32.gmra.mxu0 %v1224
      %v1291 = vpop.f32.mrf.mxu0
      %v1292 = vadd.f32 0.0, %v1291
      %v1293 = vpop.f32.mrf.mxu0
      %v1294 = vadd.f32 0.0, %v1293
      %1295 = vdwg.mxu0
      %1296 = vmatprep.subr.mxu0 0.0
      %1297 = vmatpush1.xpose.msra.mxu0 %v1223
      %1298 = vmatprep.subr.mxu0 0.0
      %1299 = vmatpush1.xpose.msra.mxu0 %v1222
      %1300 = vmatprep.subr.mxu0 0.0
      %1301 = vmatpush1.xpose.msra.mxu0 %v1221
      %1302 = vmatprep.subr.mxu0 0.0
      %1303 = vmatpush1.xpose.msra.mxu0 %v1220
      %1304 = vmatprep.subr.mxu0 0.0
      %1305 = vmatpush1.xpose.msra.mxu0 %v1219
      %1306 = vmatprep.subr.mxu0 0.0
      %1307 = vmatpush1.xpose.msra.mxu0 %v1218
      %1308 = vmatprep.subr.mxu0 0.0
      %1309 = vmatpush1.xpose.msra.mxu0 %v1217
      %1310 = vmatprep.subr.mxu0 0.0
      %1311 = vmatpush1.xpose.msra.mxu0 %v1216
      %1312 = vmatprep.subr.mxu0 0.0
      %1313 = vmatpush1.xpose.msra.mxu0 %v1215
      %1314 = vmatprep.subr.mxu0 0.0
      %1315 = vmatpush1.xpose.msra.mxu0 %v1214
      %1316 = vmatprep.subr.mxu0 0.0
      %1317 = vmatpush1.xpose.msra.mxu0 %v1213
      %1318 = vmatprep.subr.mxu0 0.0
      %1319 = vmatpush1.xpose.msra.mxu0 %v1212
      %1320 = vmatprep.subr.mxu0 0.0
      %1321 = vmatpush1.xpose.msra.mxu0 %v1211
      %1322 = vmatprep.subr.mxu0 0.0
      %1323 = vmatpush1.xpose.msra.mxu0 %v1210
      %1324 = vmatprep.subr.mxu0 0.0
      %1325 = vmatpush1.xpose.msra.mxu0 %v1209
      %1326 = vmatprep.subr.mxu0 0.0
      %1327 = vmatpush1.xpose.msra.mxu0 %v1208
      %1328 = vmatprep.subr.mxu0 0.0
      %1329 = vmatpush2.xpose.msra.mxu0 0.0
      %1330 = vmatprep.subr.mxu0 0.0
      %1331 = vmatpush2.xpose.msra.mxu0 0.0
      %1332 = vmatprep.subr.mxu0 0.0
      %1333 = vmatpush2.xpose.msra.mxu0 0.0
      %1334 = vmatprep.subr.mxu0 0.0
      %1335 = vmatpush2.xpose.msra.mxu0 0.0
      %1336 = vmatprep.subr.mxu0 0.0
      %1337 = vmatpush2.xpose.msra.mxu0 0.0
      %1338 = vmatprep.subr.mxu0 0.0
      %1339 = vmatpush2.xpose.msra.mxu0 0.0
      %1340 = vmatprep.subr.mxu0 0.0
      %1341 = vmatpush2.xpose.msra.mxu0 0.0
      %1342 = vmatprep.subr.mxu0 0.0
      %1343 = vmatpush2.xpose.msra.mxu0 0.0
      %1344 = vmatprep.subr.mxu0 0.0
      %1345 = vmatpush2.xpose.msra.mxu0 0.0
      %1346 = vmatprep.subr.mxu0 0.0
      %1347 = vmatpush2.xpose.msra.mxu0 0.0
      %1348 = vmatprep.subr.mxu0 0.0
      %1349 = vmatpush2.xpose.msra.mxu0 0.0
      %1350 = vmatprep.subr.mxu0 0.0
      %1351 = vmatpush2.xpose.msra.mxu0 0.0
      %1352 = vmatprep.subr.mxu0 0.0
      %1353 = vmatpush2.xpose.msra.mxu0 0.0
      %1354 = vmatprep.subr.mxu0 0.0
      %1355 = vmatpush2.xpose.msra.mxu0 0.0
      %1356 = vmatprep.subr.mxu0 0.0
      %1357 = vmatpush2.xpose.msra.mxu0 0.0
      %1358 = vmatprep.subr.mxu0 0.0
      %1359 = vmatpush2.xpose.msra.mxu0 0.0
      %1360 = vmatprep.mubr.f32.mxu0 0.0
      %1361 = vmatmul.mubr.f32.gmra.mxu0 %v1224
      %v1362 = vpop.f32.mrf.mxu0
      %v1363 = vadd.f32 0.0, %v1362
      %v1364 = vpop.f32.mrf.mxu0
      %1365 = vdwg.mxu0
      %s1366 = sld [smem:[#allocation2]]
      %v1367 = vstv %s1366
      %v1368 = vadd.f32 %v1292, %v1367
      %v1369 = vadd.f32 %v1294, %v1367
      %v1370 = vadd.f32 %v1363, %v1367
      %v1374 = vcombine.low %v1368, %v1369
      %v1376 = vunpack.c.l.s4 1966171168
      %v1377 = vunpack.c.0.s8 %v1376
      %v1378 = vlaneseq
      %v1379 = vshrl.u32 %v1378, 7
      %v1380 = vsub.s32 %v1377, %v1379
      %v1381 = vrot.slane %v1374, %v1380
      %v1383 = vunpack.c.l.s4 1966171168
      %v1384 = vunpack.c.0.s8 %v1383
      %v1385 = vlaneseq
      %v1386 = vshrl.u32 %v1385, 7
      %v1387 = vsub.s32 %v1384, %v1386
      %v1388 = vrot.slane %v1370, %v1387
      %v1389 = vcombine.low %v1381, %v1388
      %v1391 = vunpack.c.l.s4 1966171168
      %v1392 = vunpack.c.0.s8 %v1391
      %v1393 = vlaneseq
      %v1394 = vshrl.u32 %v1393, 7
      %v1395 = vsub.s32 %v1392, %v1394
      %v1396 = vrot.slane %v1389, %v1395
      %v1398 = vlaneseq
      %vm1399 = vcmp.ge.s32.totalorder %v1398, 0
      %vm1400 = vcmp.lt.s32.totalorder %v1398, 384
      %vm1401 = vmand %vm1399, %vm1400
      %1402 = vst.msk [vmem:[%s279] sm:$0x7] %vm1401, %v1396
      %p1403 = scmp.lt.s32.totalorder %s19, 1
      %s1404 = scalar_select %p1403, %s19, 1
      %s1405 = smul.addr %s1404, 3
      %s1406 = scalar_lea.vmem %s7, %s1405
      // Predicated region
      $region49: #{critic_forward.1} parent=47 // pred_check
        %p1407 = pneg %p189
      $region50: #{critic_forward.1} parent=47 // pred_check_branch
        %1409 = sbr.rel (%p1407) target = $region52
      $region51: #{critic_forward.1} parent=47 // pred_region
        _
      $region52: #{critic_forward.1} parent=47 // pred_fallthru
        _
    $region48: #{critic_forward.1} parent=5 // pred_fallthru
      _
    %p1410 = scmp.le.s32.totalorder 2, %s14
    // Predicated region
    $region53: #{critic_forward.1} parent=5 // pred_check
      %p1411 = pneg %p1410
    $region54: #{critic_forward.1} parent=5 // pred_check_branch
      %1413 = sbr.rel (%p1411) target = $region56
    $region55: #{critic_forward.1} parent=5 // pred_region
      %s1414 = ssub.s32 %s14, 2
      // Predicated region
      $region57: #{critic_forward.1} parent=55 // pred_check
        %p1415 = pneg %p195
      $region58: #{critic_forward.1} parent=55 // pred_check_branch
        %1417 = sbr.rel (%p1415) target = $region60
      $region59: #{critic_forward.1} parent=55 // pred_region
        %p1418 = scmp.lt.s32.totalorder %s20, 1
        %s1419 = scalar_select %p1418, %s20, 1
        %s1420 = smul.addr %s1419, 3
        %s1421 = scalar_lea.vmem %s7, %s1420
      $region60: #{critic_forward.1} parent=55 // pred_fallthru
        _
    $region56: #{critic_forward.1} parent=5 // pred_fallthru
      _
  $region6: #{critic_forward.1} parent=0 // loop_footer
    %s18 = sadd.s32 1, %s14
  $region7: #{critic_forward.1} parent=0 // loop_footer_branch
    %13 = sbr.rel target = $region3
  $region8: #{critic_forward.1} parent=0 // loop_exit
    _

</llo_original>
